<compile_context>
chip_gen: v7x
topology: tpu7x:2x2x1
jax: 0.10.0
libtpu: 0.0.40
codegen_flags: <defaults>
</compile_context>

<pallas_src>
import numpy as np
import jax
import jax.numpy as jnp
from jax.experimental import pallas as pl
from jax.experimental.pallas import tpu as pltpu

_LANES = 128


def _round_up(x, m):
    return ((x + m - 1) // m) * m


# ----------------------------------------------------------------------------
# Fused Pallas kernel (Bt images per grid step)
# ----------------------------------------------------------------------------
def _fused_kernel(p1_ref, w1_ref, t1_ref,
                  p2_ref, w2_ref, t2_ref,
                  p3_ref, w3_ref, t3_ref,
                  fw1_ref, fb1_ref, fw2_ref, fb2_ref,
                  o_ref):
    """3x (conv-as-matmul + folded BN + ReLU + global max) + MLP + softmax."""

    def branch(p_ref, w_ref, t_ref):
        M, bt, kc = p_ref.shape
        # (M*Bt, KC) @ (KC, 16): leading-dim merge is a free view (Bt % 16 == 0).
        z = jnp.dot(p_ref[...].reshape(M * bt, kc), w_ref[...],
                    preferred_element_type=jnp.float32)
        z = jnp.maximum(z + t_ref[...], 0.0)            # folded conv bias + BN shift, ReLU
        # AdaptiveMaxPool2d(1): max over the tap axis -> (Bt, 16), pure VPU.
        return jnp.max(z.reshape(M, bt, z.shape[-1]), axis=0)

    f = jnp.concatenate([branch(p1_ref, w1_ref, t1_ref),
                         branch(p2_ref, w2_ref, t2_ref),
                         branch(p3_ref, w3_ref, t3_ref)], axis=-1)   # (Bt, 48)

    # Eval BatchNorm1d(48) is folded into fc1; dropout is identity in eval.
    h = jnp.dot(f, fw1_ref[...], preferred_element_type=jnp.float32) + fb1_ref[...]   # (Bt, 8)
    logits = (jnp.dot(h, fw2_ref[...], preferred_element_type=jnp.float32)
              + fb2_ref[...])                                                          # (Bt, 128)

    # Softmax(dim=1); padded lanes carry a -1e30 bias so exp() is exactly 0 there.
    logits = logits - jnp.max(logits, axis=-1, keepdims=True)
    e = jnp.exp(logits)
    o_ref[...] = e / jnp.sum(e, axis=-1, keepdims=True)


# ----------------------------------------------------------------------------
# Wrapper
# ----------------------------------------------------------------------------
def _im2col_kernel_eq_stride(x_nhwc, K):
    """im2col for a conv whose stride equals its kernel size (pad = K // 2)."""
    N, H, W, C = x_nhwc.shape
    pad = K // 2
    S = K
    OH = (H + 2 * pad - K) // S + 1
    OW = (W + 2 * pad - K) // S + 1
    xp = jnp.pad(x_nhwc, ((0, 0),
                          (pad, max(0, OH * S - pad - H)),
                          (pad, max(0, OW * S - pad - W)),
                          (0, 0)))
    xp = xp[:, :OH * S, :OW * S, :]
    patches = xp.reshape(N, OH, S, OW, S, C).transpose(0, 1, 3, 2, 4, 5)
    return patches.reshape(N, OH * OW, K * K * C)     # last axis order (ky, kx, c)


def forward(x_nchw, params, eps=1e-5, target_bt=256):
    x = jnp.transpose(x_nchw, (0, 2, 3, 1)).astype(jnp.float32)   # NCHW -> NHWC
    N = x.shape[0]

    # Batch tile: multiple of 16 (clean bf16 sublane tiling); for larger batches
    # keep >= 2 grid steps so both v7x TensorCores receive work.
    if N <= 16:
        bt = _round_up(max(N, 1), 16)
    else:
        bt = min(target_bt, _round_up((N + 1) // 2, 16))
    n_pad = _round_up(N, bt)
    grid = n_pad // bt

    args, in_specs = [], []
    vmem_need = 0
    for (w, b, g, be, mu, var) in params["branches"]:
        K, _, cin, cout = w.shape
        patches = _im2col_kernel_eq_stride(x, K)                  # (N, M, KC) f32
        M, KC = patches.shape[1], patches.shape[2]
        patches = jnp.transpose(patches, (1, 0, 2))               # tap-major (M, N, KC)
        patches = jnp.pad(patches, ((0, 0), (0, n_pad - N), (0, 0)))
        patches = patches.astype(jnp.bfloat16)

        s = g / jnp.sqrt(var + eps)                               # BN2d scale
        w_f = (w * s).reshape(K * K * cin, cout).astype(jnp.bfloat16)    # scale folded into weights
        t = (be - s * mu + s * b).reshape(1, cout).astype(jnp.float32)   # conv bias + BN shift

        args += [patches, w_f, t]
        in_specs += [pl.BlockSpec((M, bt, KC), lambda i: (0, i, 0)),
                     pl.BlockSpec((KC, cout), lambda i: (0, 0)),
                     pl.BlockSpec((1, cout), lambda i: (0, 0))]
        vmem_need += 2 * M * bt * KC * 2                          # double-buffered bf16 block

    # Fold eval-mode BatchNorm1d(48) into fc1; keep fc1 un-split (single matmul).
    ng, nbe, nmu, nvar = params["concat_norm"]
    w1, b1, w2, b2 = params["fc"]
    ns = ng / jnp.sqrt(nvar + eps)
    nt = nbe - ns * nmu
    fw1 = (ns[:, None] * w1).astype(jnp.float32)                  # (48, 8)
    fb1 = (nt @ w1 + b1).reshape(1, -1).astype(jnp.float32)       # (1, 8)
    hdim, nc = w2.shape
    # Lane-dense classifier: pad classes to 128 lanes; padded lanes get -1e30 bias.
    fw2 = jnp.zeros((hdim, _LANES), jnp.float32).at[:, :nc].set(w2.astype(jnp.float32))
    fb2 = jnp.full((1, _LANES), -1e30, jnp.float32).at[0, :nc].set(b2.astype(jnp.float32))

    args += [fw1, fb1, fw2, fb2]
    in_specs += [pl.BlockSpec(fw1.shape, lambda i: (0, 0)),
                 pl.BlockSpec(fb1.shape, lambda i: (0, 0)),
                 pl.BlockSpec(fw2.shape, lambda i: (0, 0)),
                 pl.BlockSpec(fb2.shape, lambda i: (0, 0))]

    vmem_need += 2 * bt * _LANES * 4                              # double-buffered output block
    vmem_limit = int(min(48 << 20, max(16 << 20, 4 * vmem_need))) # stays under v7x 64 MiB physical

    out = pl.pallas_call(
        _fused_kernel,
        out_shape=jax.ShapeDtypeStruct((n_pad, _LANES), jnp.float32),
        grid_spec=pltpu.PrefetchScalarGridSpec(
            num_scalar_prefetch=0,
            grid=(grid,),
            in_specs=in_specs,
            out_specs=pl.BlockSpec((bt, _LANES), lambda i: (i, 0)),
        ),
        compiler_params=pltpu.CompilerParams(
            dimension_semantics=("parallel",),
            vmem_limit_bytes=vmem_limit),
    )(*args)
    return out[:N, :nc]


# ----------------------------------------------------------------------------
# Pure-JAX reference (same math, XLA convs, f32) for validation
# ----------------------------------------------------------------------------
def reference_forward(x_nchw, params, eps=1e-5):
    x = jnp.transpose(x_nchw, (0, 2, 3, 1))
    feats = []
    for (w, b, g, be, mu, var) in params["branches"]:
        K = w.shape[0]
        p = K // 2
        z = jax.lax.conv_general_dilated(
            x, w, (K, K), [(p, p), (p, p)],
            dimension_numbers=("NHWC", "HWIO", "NHWC")) + b
        z = g * (z - mu) / jnp.sqrt(var + eps) + be
        z = jnp.maximum(z, 0.0)
        feats.append(jnp.max(z, axis=(1, 2)))                     # AdaptiveMaxPool2d(1)
    f = jnp.concatenate(feats, axis=1)                            # (N, 48)
    ng, nbe, nmu, nvar = params["concat_norm"]
    f = ng * (f - nmu) / jnp.sqrt(nvar + eps) + nbe               # BatchNorm1d (eval)
    w1, b1, w2, b2 = params["fc"]                                 # dropout = identity (eval)
    logits = (f @ w1 + b1) @ w2 + b2
    return jax.nn.softmax(logits, axis=1)


# ----------------------------------------------------------------------------
# Deterministic parameter construction (matches the torch module's shapes)
# ----------------------------------------------------------------------------
def make_params(key, num_classes=3):
    kernel_sizes = [7, 9, 5]          # branch1, branch2, branch3 (stride == kernel)
    cin, cout = 3, 16
    branches = []
    for K in kernel_sizes:
        key, kw, kb, kg, kbe, km, kv = jax.random.split(key, 7)
        fan_in = cin * K * K
        w = jax.random.normal(kw, (K, K, cin, cout), jnp.float32) / np.sqrt(fan_in)
        b = 0.1 * jax.random.normal(kb, (cout,), jnp.float32)
        g = 1.0 + 0.1 * jax.random.normal(kg, (cout,), jnp.float32)
        be = 0.1 * jax.random.normal(kbe, (cout,), jnp.float32)
        mu = 0.1 * jax.random.normal(km, (cout,), jnp.float32)
        var = 1.0 + 0.1 * jnp.abs(jax.random.normal(kv, (cout,), jnp.float32))
        branches.append((w, b, g, be, mu, var))
    feat = cout * len(kernel_sizes)                                # 48
    key, kg, kbe, km, kv = jax.random.split(key, 5)
    concat_norm = (1.0 + 0.1 * jax.random.normal(kg, (feat,), jnp.float32),
                   0.1 * jax.random.normal(kbe, (feat,), jnp.float32),
                   0.1 * jax.random.normal(km, (feat,), jnp.float32),
                   1.0 + 0.1 * jnp.abs(jax.random.normal(kv, (feat,), jnp.float32)))
    key, k1, k2, k3, k4 = jax.random.split(key, 5)
    w1 = jax.random.normal(k1, (feat, 8), jnp.float32) / np.sqrt(feat)
    b1 = 0.1 * jax.random.normal(k2, (8,), jnp.float32)
    w2 = jax.random.normal(k3, (8, num_classes), jnp.float32) / np.sqrt(8)
    b2 = 0.1 * jax.random.normal(k4, (num_classes,), jnp.float32)
    return {"branches": branches, "concat_norm": concat_norm, "fc": (w1, b1, w2, b2)}


# ----------------------------------------------------------------------------
if __name__ == "__main__":
    key = jax.random.PRNGKey(0)
    key, kx = jax.random.split(key)
    x = jax.random.normal(kx, (2, 3, 16, 16), jnp.float32)    # NCHW, like torch

    params = make_params(key, num_classes=3)

    out = jax.block_until_ready(jax.jit(forward)(x, params))
    ref = jax.block_until_ready(reference_forward(x, params))

    assert out.shape == (2, 3), out.shape
    # bf16 matmul operands (f32 accumulation) -> allow ~1e-2 on softmax outputs.
    assert np.allclose(np.asarray(out), np.asarray(ref), rtol=1e-2, atol=1e-2), (
        np.max(np.abs(np.asarray(out) - np.asarray(ref))))
    assert np.allclose(np.asarray(out).sum(axis=1), 1.0, atol=1e-3)

    print("KERNEL_OK")
</pallas_src>

<mosaic_0001>
module attributes {stable_mosaic.version = 11 : i64} {
  func.func @_fused_kernel(%arg0: i32, %arg1: memref<9x16x147xbf16, #tpu.memory_space<vmem>>, %arg2: memref<147x16xbf16, #tpu.memory_space<vmem>>, %arg3: memref<1x16xf32, #tpu.memory_space<vmem>>, %arg4: memref<4x16x243xbf16, #tpu.memory_space<vmem>>, %arg5: memref<243x16xbf16, #tpu.memory_space<vmem>>, %arg6: memref<1x16xf32, #tpu.memory_space<vmem>>, %arg7: memref<16x16x75xbf16, #tpu.memory_space<vmem>>, %arg8: memref<75x16xbf16, #tpu.memory_space<vmem>>, %arg9: memref<1x16xf32, #tpu.memory_space<vmem>>, %arg10: memref<48x8xf32, #tpu.memory_space<vmem>>, %arg11: memref<1x8xf32, #tpu.memory_space<vmem>>, %arg12: memref<8x128xf32, #tpu.memory_space<vmem>>, %arg13: memref<1x128xf32, #tpu.memory_space<vmem>>, %arg14: memref<16x128xf32, #tpu.memory_space<vmem>>) attributes {dimension_semantics = [#tpu.dimension_semantics<parallel>], iteration_bounds = array<i64: 1>, scalar_prefetch = 0 : i64, scratch_operands = 0 : i64, tpu.core_type = #tpu.core_type<tc>, window_params = [{transform_indices = @transform_0, window_bounds = array<i64: 9, 16, 147>}, {pipeline_mode = #tpu.pipeline_mode<synchronous>, transform_indices = @transform_1, window_bounds = array<i64: 147, 16>}, {pipeline_mode = #tpu.pipeline_mode<synchronous>, transform_indices = @transform_2, window_bounds = array<i64: 1, 16>}, {transform_indices = @transform_3, window_bounds = array<i64: 4, 16, 243>}, {pipeline_mode = #tpu.pipeline_mode<synchronous>, transform_indices = @transform_4, window_bounds = array<i64: 243, 16>}, {pipeline_mode = #tpu.pipeline_mode<synchronous>, transform_indices = @transform_5, window_bounds = array<i64: 1, 16>}, {transform_indices = @transform_6, window_bounds = array<i64: 16, 16, 75>}, {pipeline_mode = #tpu.pipeline_mode<synchronous>, transform_indices = @transform_7, window_bounds = array<i64: 75, 16>}, {pipeline_mode = #tpu.pipeline_mode<synchronous>, transform_indices = @transform_8, window_bounds = array<i64: 1, 16>}, {pipeline_mode = #tpu.pipeline_mode<synchronous>, transform_indices = @transform_9, window_bounds = array<i64: 48, 8>}, {pipeline_mode = #tpu.pipeline_mode<synchronous>, transform_indices = @transform_10, window_bounds = array<i64: 1, 8>}, {pipeline_mode = #tpu.pipeline_mode<synchronous>, transform_indices = @transform_11, window_bounds = array<i64: 8, 128>}, {pipeline_mode = #tpu.pipeline_mode<synchronous>, transform_indices = @transform_12, window_bounds = array<i64: 1, 128>}, {transform_indices = @transform_13, window_bounds = array<i64: 16, 128>}]} {
    %c0 = arith.constant 0 : index
    %c0_0 = arith.constant 0 : index
    %c0_1 = arith.constant 0 : index
    %0 = vector.load %arg1[%c0, %c0_0, %c0_1] : memref<9x16x147xbf16, #tpu.memory_space<vmem>>, vector<9x16x147xbf16>
    %1 = vector.shape_cast %0 : vector<9x16x147xbf16> to vector<144x147xbf16>
    %c0_2 = arith.constant 0 : index
    %c0_3 = arith.constant 0 : index
    %2 = vector.load %arg2[%c0_2, %c0_3] : memref<147x16xbf16, #tpu.memory_space<vmem>>, vector<147x16xbf16>
    %cst = arith.constant dense<0.000000e+00> : vector<144x16xf32>
    %3 = tpu.matmul %1, %2, %cst {dimension_numbers = #tpu.dot_dimension_numbers<[1], [0], [0], [1], [0, 0, 1, 1], [], []>} : vector<144x147xbf16>, vector<147x16xbf16>, vector<144x16xf32> -> vector<144x16xf32>
    %c0_4 = arith.constant 0 : index
    %c0_5 = arith.constant 0 : index
    %4 = vector.load %arg3[%c0_4, %c0_5] : memref<1x16xf32, #tpu.memory_space<vmem>>, vector<1x16xf32>
    %5 = vector.broadcast %4 : vector<1x16xf32> to vector<144x16xf32>
    %6 = arith.addf %3, %5 : vector<144x16xf32>
    %cst_6 = arith.constant 0.000000e+00 : f32
    %7 = vector.broadcast %cst_6 : f32 to vector<144x16xf32>
    %8 = arith.maximumf %6, %7 : vector<144x16xf32>
    %9 = vector.shape_cast %8 : vector<144x16xf32> to vector<9x16x16xf32>
    %cst_7 = arith.constant dense<0xFF800000> : vector<16x16xf32>
    %10 = vector.multi_reduction <maximumf>, %9, %cst_7 [0] : vector<9x16x16xf32> to vector<16x16xf32>
    %c0_8 = arith.constant 0 : index
    %c0_9 = arith.constant 0 : index
    %c0_10 = arith.constant 0 : index
    %11 = vector.load %arg4[%c0_8, %c0_9, %c0_10] : memref<4x16x243xbf16, #tpu.memory_space<vmem>>, vector<4x16x243xbf16>
    %12 = vector.shape_cast %11 : vector<4x16x243xbf16> to vector<64x243xbf16>
    %c0_11 = arith.constant 0 : index
    %c0_12 = arith.constant 0 : index
    %13 = vector.load %arg5[%c0_11, %c0_12] : memref<243x16xbf16, #tpu.memory_space<vmem>>, vector<243x16xbf16>
    %cst_13 = arith.constant dense<0.000000e+00> : vector<64x16xf32>
    %14 = tpu.matmul %12, %13, %cst_13 {dimension_numbers = #tpu.dot_dimension_numbers<[1], [0], [0], [1], [0, 0, 1, 1], [], []>} : vector<64x243xbf16>, vector<243x16xbf16>, vector<64x16xf32> -> vector<64x16xf32>
    %c0_14 = arith.constant 0 : index
    %c0_15 = arith.constant 0 : index
    %15 = vector.load %arg6[%c0_14, %c0_15] : memref<1x16xf32, #tpu.memory_space<vmem>>, vector<1x16xf32>
    %16 = vector.broadcast %15 : vector<1x16xf32> to vector<64x16xf32>
    %17 = arith.addf %14, %16 : vector<64x16xf32>
    %cst_16 = arith.constant 0.000000e+00 : f32
    %18 = vector.broadcast %cst_16 : f32 to vector<64x16xf32>
    %19 = arith.maximumf %17, %18 : vector<64x16xf32>
    %20 = vector.shape_cast %19 : vector<64x16xf32> to vector<4x16x16xf32>
    %cst_17 = arith.constant dense<0xFF800000> : vector<16x16xf32>
    %21 = vector.multi_reduction <maximumf>, %20, %cst_17 [0] : vector<4x16x16xf32> to vector<16x16xf32>
    %c0_18 = arith.constant 0 : index
    %c0_19 = arith.constant 0 : index
    %c0_20 = arith.constant 0 : index
    %22 = vector.load %arg7[%c0_18, %c0_19, %c0_20] : memref<16x16x75xbf16, #tpu.memory_space<vmem>>, vector<16x16x75xbf16>
    %23 = vector.shape_cast %22 : vector<16x16x75xbf16> to vector<256x75xbf16>
    %c0_21 = arith.constant 0 : index
    %c0_22 = arith.constant 0 : index
    %24 = vector.load %arg8[%c0_21, %c0_22] : memref<75x16xbf16, #tpu.memory_space<vmem>>, vector<75x16xbf16>
    %cst_23 = arith.constant dense<0.000000e+00> : vector<256x16xf32>
    %25 = tpu.matmul %23, %24, %cst_23 {dimension_numbers = #tpu.dot_dimension_numbers<[1], [0], [0], [1], [0, 0, 1, 1], [], []>} : vector<256x75xbf16>, vector<75x16xbf16>, vector<256x16xf32> -> vector<256x16xf32>
    %c0_24 = arith.constant 0 : index
    %c0_25 = arith.constant 0 : index
    %26 = vector.load %arg9[%c0_24, %c0_25] : memref<1x16xf32, #tpu.memory_space<vmem>>, vector<1x16xf32>
    %27 = vector.broadcast %26 : vector<1x16xf32> to vector<256x16xf32>
    %28 = arith.addf %25, %27 : vector<256x16xf32>
    %cst_26 = arith.constant 0.000000e+00 : f32
    %29 = vector.broadcast %cst_26 : f32 to vector<256x16xf32>
    %30 = arith.maximumf %28, %29 : vector<256x16xf32>
    %31 = vector.shape_cast %30 : vector<256x16xf32> to vector<16x16x16xf32>
    %cst_27 = arith.constant dense<0xFF800000> : vector<16x16xf32>
    %32 = vector.multi_reduction <maximumf>, %31, %cst_27 [0] : vector<16x16x16xf32> to vector<16x16xf32>
    %33 = tpu.concatenate %10, %21, %32 in 1 : vector<16x16xf32>, vector<16x16xf32>, vector<16x16xf32> -> vector<16x48xf32>
    %c0_28 = arith.constant 0 : index
    %c0_29 = arith.constant 0 : index
    %34 = vector.load %arg10[%c0_28, %c0_29] : memref<48x8xf32, #tpu.memory_space<vmem>>, vector<48x8xf32>
    %cst_30 = arith.constant dense<0.000000e+00> : vector<16x8xf32>
    %35 = tpu.matmul %33, %34, %cst_30 {dimension_numbers = #tpu.dot_dimension_numbers<[1], [0], [0], [1], [0, 0, 1, 1], [], []>} : vector<16x48xf32>, vector<48x8xf32>, vector<16x8xf32> -> vector<16x8xf32>
    %c0_31 = arith.constant 0 : index
    %c0_32 = arith.constant 0 : index
    %36 = vector.load %arg11[%c0_31, %c0_32] : memref<1x8xf32, #tpu.memory_space<vmem>>, vector<1x8xf32>
    %37 = vector.broadcast %36 : vector<1x8xf32> to vector<16x8xf32>
    %38 = arith.addf %35, %37 : vector<16x8xf32>
    %c0_33 = arith.constant 0 : index
    %c0_34 = arith.constant 0 : index
    %39 = vector.load %arg12[%c0_33, %c0_34] : memref<8x128xf32, #tpu.memory_space<vmem>>, vector<8x128xf32>
    %cst_35 = arith.constant dense<0.000000e+00> : vector<16x128xf32>
    %40 = tpu.matmul %38, %39, %cst_35 {dimension_numbers = #tpu.dot_dimension_numbers<[1], [0], [0], [1], [0, 0, 1, 1], [], []>} : vector<16x8xf32>, vector<8x128xf32>, vector<16x128xf32> -> vector<16x128xf32>
    %c0_36 = arith.constant 0 : index
    %c0_37 = arith.constant 0 : index
    %41 = vector.load %arg13[%c0_36, %c0_37] : memref<1x128xf32, #tpu.memory_space<vmem>>, vector<1x128xf32>
    %42 = vector.broadcast %41 : vector<1x128xf32> to vector<16x128xf32>
    %43 = arith.addf %40, %42 : vector<16x128xf32>
    %cst_38 = arith.constant dense<0xFF800000> : vector<16xf32>
    %44 = vector.multi_reduction <maximumf>, %43, %cst_38 [1] : vector<16x128xf32> to vector<16xf32>
    %45 = vector.shape_cast %44 : vector<16xf32> to vector<16x1xf32>
    %46 = vector.broadcast %45 : vector<16x1xf32> to vector<16x128xf32>
    %47 = arith.subf %43, %46 : vector<16x128xf32>
    %48 = math.exp %47 : vector<16x128xf32>
    %cst_39 = arith.constant dense<0.000000e+00> : vector<16xf32>
    %49 = vector.multi_reduction <add>, %48, %cst_39 [1] : vector<16x128xf32> to vector<16xf32>
    %50 = vector.shape_cast %49 : vector<16xf32> to vector<16x1xf32>
    %51 = vector.broadcast %50 : vector<16x1xf32> to vector<16x128xf32>
    %52 = arith.divf %48, %51 : vector<16x128xf32>
    %c0_40 = arith.constant 0 : index
    %c0_41 = arith.constant 0 : index
    %53 = vector.load %arg14[%c0_40, %c0_41] : memref<16x128xf32, #tpu.memory_space<vmem>>, vector<16x128xf32>
    tpu.vector_store %arg14[%c0_40, %c0_41], %52 {strides = array<i32>} : memref<16x128xf32, #tpu.memory_space<vmem>>, vector<16x128xf32>,
    return
  }
  func.func @transform_0(%arg0: i32) -> (i32, i32, i32) {
    %c0_i32 = arith.constant 0 : i32
    %c0_i32_0 = arith.constant 0 : i32
    %c0_i32_1 = arith.constant 0 : i32
    return %c0_i32, %arg0, %c0_i32_0 : i32, i32, i32
  }
  func.func @transform_1(%arg0: i32) -> (i32, i32) {
    %c0_i32 = arith.constant 0 : i32
    %c0_i32_0 = arith.constant 0 : i32
    %c0_i32_1 = arith.constant 0 : i32
    return %c0_i32, %c0_i32_0 : i32, i32
  }
  func.func @transform_2(%arg0: i32) -> (i32, i32) {
    %c0_i32 = arith.constant 0 : i32
    %c0_i32_0 = arith.constant 0 : i32
    %c0_i32_1 = arith.constant 0 : i32
    return %c0_i32, %c0_i32_0 : i32, i32
  }
  func.func @transform_3(%arg0: i32) -> (i32, i32, i32) {
    %c0_i32 = arith.constant 0 : i32
    %c0_i32_0 = arith.constant 0 : i32
    %c0_i32_1 = arith.constant 0 : i32
    return %c0_i32, %arg0, %c0_i32_0 : i32, i32, i32
  }
  func.func @transform_4(%arg0: i32) -> (i32, i32) {
    %c0_i32 = arith.constant 0 : i32
    %c0_i32_0 = arith.constant 0 : i32
    %c0_i32_1 = arith.constant 0 : i32
    return %c0_i32, %c0_i32_0 : i32, i32
  }
  func.func @transform_5(%arg0: i32) -> (i32, i32) {
    %c0_i32 = arith.constant 0 : i32
    %c0_i32_0 = arith.constant 0 : i32
    %c0_i32_1 = arith.constant 0 : i32
    return %c0_i32, %c0_i32_0 : i32, i32
  }
  func.func @transform_6(%arg0: i32) -> (i32, i32, i32) {
    %c0_i32 = arith.constant 0 : i32
    %c0_i32_0 = arith.constant 0 : i32
    %c0_i32_1 = arith.constant 0 : i32
    return %c0_i32, %arg0, %c0_i32_0 : i32, i32, i32
  }
  func.func @transform_7(%arg0: i32) -> (i32, i32) {
    %c0_i32 = arith.constant 0 : i32
    %c0_i32_0 = arith.constant 0 : i32
    %c0_i32_1 = arith.constant 0 : i32
    return %c0_i32, %c0_i32_0 : i32, i32
  }
  func.func @transform_8(%arg0: i32) -> (i32, i32) {
    %c0_i32 = arith.constant 0 : i32
    %c0_i32_0 = arith.constant 0 : i32
    %c0_i32_1 = arith.constant 0 : i32
    return %c0_i32, %c0_i32_0 : i32, i32
  }
  func.func @transform_9(%arg0: i32) -> (i32, i32) {
    %c0_i32 = arith.constant 0 : i32
    %c0_i32_0 = arith.constant 0 : i32
    %c0_i32_1 = arith.constant 0 : i32
    return %c0_i32, %c0_i32_0 : i32, i32
  }
  func.func @transform_10(%arg0: i32) -> (i32, i32) {
    %c0_i32 = arith.constant 0 : i32
    %c0_i32_0 = arith.constant 0 : i32
    %c0_i32_1 = arith.constant 0 : i32
    return %c0_i32, %c0_i32_0 : i32, i32
  }
  func.func @transform_11(%arg0: i32) -> (i32, i32) {
    %c0_i32 = arith.constant 0 : i32
    %c0_i32_0 = arith.constant 0 : i32
    %c0_i32_1 = arith.constant 0 : i32
    return %c0_i32, %c0_i32_0 : i32, i32
  }
  func.func @transform_12(%arg0: i32) -> (i32, i32) {
    %c0_i32 = arith.constant 0 : i32
    %c0_i32_0 = arith.constant 0 : i32
    %c0_i32_1 = arith.constant 0 : i32
    return %c0_i32, %c0_i32_0 : i32, i32
  }
  func.func @transform_13(%arg0: i32) -> (i32, i32) {
    %c0_i32 = arith.constant 0 : i32
    %c0_i32_0 = arith.constant 0 : i32
    return %arg0, %c0_i32 : i32, i32
  }
}

</mosaic_0001>

<llo_original>
// kernel: forward.1
$region0: #{forward.1}
  #allocation0 [shape = 'u32[]', space=smem, size = 0x4, offset = 0x4, fixed_abs, tag = 'smem constant byte address 0x4 - core index']
  #allocation1 [shape = 'u32[144,128]{1,0:T(1,128)}', space=vmem, size = 0x12000, scoped, tag = 'internal scratch']
  %s0 = inlined_call_operand.vmem [shape: bf16[9,16,147], index: 0, kind: input, shape index: {}]
  %s1 = inlined_call_operand.vmem [shape: bf16[147,16], index: 1, kind: input, shape index: {}]
  %s2 = inlined_call_operand.vmem [shape: f32[1,16], index: 2, kind: input, shape index: {}]
  %s3 = inlined_call_operand.vmem [shape: bf16[4,16,243], index: 3, kind: input, shape index: {}]
  %s4 = inlined_call_operand.vmem [shape: bf16[243,16], index: 4, kind: input, shape index: {}]
  %s5 = inlined_call_operand.vmem [shape: f32[1,16], index: 5, kind: input, shape index: {}]
  %s6 = inlined_call_operand.vmem [shape: bf16[16,16,75], index: 6, kind: input, shape index: {}]
  %s7 = inlined_call_operand.vmem [shape: bf16[75,16], index: 7, kind: input, shape index: {}]
  %s8 = inlined_call_operand.vmem [shape: f32[1,16], index: 8, kind: input, shape index: {}]
  %s9 = inlined_call_operand.vmem [shape: f32[48,8], index: 9, kind: input, shape index: {}]
  %s10 = inlined_call_operand.vmem [shape: f32[1,8], index: 10, kind: input, shape index: {}]
  %s11 = inlined_call_operand.vmem [shape: f32[8,128], index: 11, kind: input, shape index: {}]
  %s12 = inlined_call_operand.vmem [shape: f32[1,128], index: 12, kind: input, shape index: {}]
  %s13 = inlined_call_operand.vmem [shape: f32[16,128], index: 13, kind: output, shape index: {}]
  %s14 = sld [smem:[#allocation0]]
  $region62: #{forward.1} parent=0
    _
  %s16 = ssub.s32 1, %s14
  %s17 = scalar_select 0, %s16, %s14
  // Predicated region
  $region2: #{forward.1} parent=0 // pred_check
    _
  $region3: #{forward.1} parent=0 // pred_check_branch
    %19 = sbr.rel (0) target = $region5
  $region4: #{forward.1} parent=0 // pred_region
    _
  $region5: #{forward.1} parent=0 // pred_fallthru
    _
  // Predicated region
  $region6: #{forward.1} parent=0 // pred_check
    _
  $region7: #{forward.1} parent=0 // pred_check_branch
    %21 = sbr.rel (0) target = $region9
  $region8: #{forward.1} parent=0 // pred_region
    _
  $region9: #{forward.1} parent=0 // pred_fallthru
    _
  // Predicated region
  $region10: #{forward.1} parent=0 // pred_check
    _
  $region11: #{forward.1} parent=0 // pred_check_branch
    %23 = sbr.rel (0) target = $region13
  $region12: #{forward.1} parent=0 // pred_region
    _
  $region13: #{forward.1} parent=0 // pred_fallthru
    _
  // Predicated region
  $region14: #{forward.1} parent=0 // pred_check
    _
  $region15: #{forward.1} parent=0 // pred_check_branch
    %25 = sbr.rel (0) target = $region17
  $region16: #{forward.1} parent=0 // pred_region
    _
  $region17: #{forward.1} parent=0 // pred_fallthru
    _
  // Predicated region
  $region18: #{forward.1} parent=0 // pred_check
    _
  $region19: #{forward.1} parent=0 // pred_check_branch
    %27 = sbr.rel (0) target = $region21
  $region20: #{forward.1} parent=0 // pred_region
    _
  $region21: #{forward.1} parent=0 // pred_fallthru
    _
  // Predicated region
  $region22: #{forward.1} parent=0 // pred_check
    _
  $region23: #{forward.1} parent=0 // pred_check_branch
    %29 = sbr.rel (0) target = $region25
  $region24: #{forward.1} parent=0 // pred_region
    _
  $region25: #{forward.1} parent=0 // pred_fallthru
    _
  // Predicated region
  $region26: #{forward.1} parent=0 // pred_check
    _
  $region27: #{forward.1} parent=0 // pred_check_branch
    %31 = sbr.rel (0) target = $region29
  $region28: #{forward.1} parent=0 // pred_region
    _
  $region29: #{forward.1} parent=0 // pred_fallthru
    _
  // Predicated region
  $region30: #{forward.1} parent=0 // pred_check
    _
  $region31: #{forward.1} parent=0 // pred_check_branch
    %33 = sbr.rel (0) target = $region33
  $region32: #{forward.1} parent=0 // pred_region
    _
  $region33: #{forward.1} parent=0 // pred_fallthru
    _
  // Predicated region
  $region34: #{forward.1} parent=0 // pred_check
    _
  $region35: #{forward.1} parent=0 // pred_check_branch
    %35 = sbr.rel (0) target = $region37
  $region36: #{forward.1} parent=0 // pred_region
    _
  $region37: #{forward.1} parent=0 // pred_fallthru
    _
  // Predicated region
  $region38: #{forward.1} parent=0 // pred_check
    _
  $region39: #{forward.1} parent=0 // pred_check_branch
    %37 = sbr.rel (0) target = $region41
  $region40: #{forward.1} parent=0 // pred_region
    _
  $region41: #{forward.1} parent=0 // pred_fallthru
    _
  // Predicated region
  $region42: #{forward.1} parent=0 // pred_check
    _
  $region43: #{forward.1} parent=0 // pred_check_branch
    %39 = sbr.rel (0) target = $region45
  $region44: #{forward.1} parent=0 // pred_region
    _
  $region45: #{forward.1} parent=0 // pred_fallthru
    _
  // Predicated region
  $region46: #{forward.1} parent=0 // pred_check
    _
  $region47: #{forward.1} parent=0 // pred_check_branch
    %41 = sbr.rel (0) target = $region49
  $region48: #{forward.1} parent=0 // pred_region
    _
  $region49: #{forward.1} parent=0 // pred_fallthru
    _
  // Predicated region
  $region50: #{forward.1} parent=0 // pred_check
    _
  $region51: #{forward.1} parent=0 // pred_check_branch
    %43 = sbr.rel (0) target = $region53
  $region52: #{forward.1} parent=0 // pred_region
    _
  $region53: #{forward.1} parent=0 // pred_fallthru
    _
  %v45 = vld [vmem:[%s0] sm:$0xff]
  %v46 = vld [vmem:[%s0 + $0x8] sm:$0xff]
  %v47 = vld [vmem:[%s0 + $0x10] sm:$0xff]
  %v48 = vld [vmem:[%s0 + $0x18] sm:$0xff]
  %v49 = vld [vmem:[%s0 + $0x20] sm:$0xff]
  %v50 = vld [vmem:[%s0 + $0x28] sm:$0xff]
  %v51 = vld [vmem:[%s0 + $0x30] sm:$0xff]
  %v52 = vld [vmem:[%s0 + $0x38] sm:$0xff]
  %v53 = vld [vmem:[%s0 + $0x40] sm:$0xff]
  %v54 = vld [vmem:[%s0 + $0x48] sm:$0xff]
  %v55 = vld [vmem:[%s0 + $0x50] sm:$0xff]
  %v56 = vld [vmem:[%s0 + $0x58] sm:$0xff]
  %v57 = vld [vmem:[%s0 + $0x60] sm:$0xff]
  %v58 = vld [vmem:[%s0 + $0x68] sm:$0xff]
  %v59 = vld [vmem:[%s0 + $0x70] sm:$0xff]
  %v60 = vld [vmem:[%s0 + $0x78] sm:$0xff]
  %v61 = vld [vmem:[%s0 + $0x80] sm:$0xff]
  %v62 = vld [vmem:[%s0 + $0x88] sm:$0xff]
  %v63 = vld [vmem:[%s1] sm:$0xf]
  %v64 = vld [vmem:[%s1 + $0x4] sm:$0xf]
  %v65 = vld [vmem:[%s1 + $0x8] sm:$0xf]
  %v66 = vld [vmem:[%s1 + $0xc] sm:$0xf]
  %v67 = vld [vmem:[%s1 + $0x10] sm:$0xf]
  %v68 = vld [vmem:[%s1 + $0x14] sm:$0xf]
  %v69 = vld [vmem:[%s1 + $0x18] sm:$0xf]
  %v70 = vld [vmem:[%s1 + $0x1c] sm:$0xf]
  %v71 = vld [vmem:[%s1 + $0x20] sm:$0xf]
  %v72 = vld [vmem:[%s1 + $0x24] sm:$0xf]
  %v73 = vld [vmem:[%s1 + $0x28] sm:$0xf]
  %v74 = vld [vmem:[%s1 + $0x2c] sm:$0xf]
  %v75 = vld [vmem:[%s1 + $0x30] sm:$0xf]
  %v76 = vld [vmem:[%s1 + $0x34] sm:$0xf]
  %v77 = vld [vmem:[%s1 + $0x38] sm:$0xf]
  %v78 = vld [vmem:[%s1 + $0x3c] sm:$0xf]
  %v79 = vld [vmem:[%s1 + $0x40] sm:$0xf]
  %v80 = vld [vmem:[%s1 + $0x44] sm:$0xf]
  %v81 = vld [vmem:[%s1 + $0x48] sm:$0x3]
  %v82 = vld [vmem:[%s2] sm:$0x1]
  %v84 = vlaneseq
  %v85 = vshrl.u32 %v84, 7
  %v86 = vsub.s32 0, %v85
  %v87 = vrot.slane %v82, %v86
  %v107 = vunpack.c.l.b16 %v45
  %v108 = vunpack.c.h.b16 %v45
  %v109 = vunpack.c.l.b16 %v46
  %v110 = vunpack.c.h.b16 %v46
  %v111 = vunpack.c.l.b16 %v47
  %v112 = vunpack.c.h.b16 %v47
  %v113 = vunpack.c.l.b16 %v48
  %v114 = vunpack.c.h.b16 %v48
  %v115 = vunpack.c.l.b16 %v49
  %v116 = vunpack.c.h.b16 %v49
  %v117 = vunpack.c.l.b16 %v50
  %v118 = vunpack.c.h.b16 %v50
  %v119 = vunpack.c.l.b16 %v51
  %v120 = vunpack.c.h.b16 %v51
  %v121 = vunpack.c.l.b16 %v52
  %v122 = vunpack.c.h.b16 %v52
  %v123 = vunpack.c.l.b16 %v53
  %v124 = vunpack.c.h.b16 %v53
  %v125 = vunpack.c.l.b16 %v54
  %v126 = vunpack.c.h.b16 %v54
  %v127 = vunpack.c.l.b16 %v55
  %v128 = vunpack.c.h.b16 %v55
  %v129 = vunpack.c.l.b16 %v56
  %v130 = vunpack.c.h.b16 %v56
  %v131 = vunpack.c.l.b16 %v57
  %v132 = vunpack.c.h.b16 %v57
  %v133 = vunpack.c.l.b16 %v58
  %v134 = vunpack.c.h.b16 %v58
  %v135 = vunpack.c.l.b16 %v59
  %v136 = vunpack.c.h.b16 %v59
  %v137 = vunpack.c.l.b16 %v60
  %v138 = vunpack.c.h.b16 %v60
  %v139 = vunpack.c.l.b16 %v61
  %v140 = vunpack.c.h.b16 %v61
  %v141 = vunpack.c.l.b16 %v62
  %v142 = vunpack.c.h.b16 %v62
  %v143 = vpack.c.b16 %v109, %v107
  %v144 = vpack.c.b16 %v110, %v108
  %v145 = vpack.c.b16 %v113, %v111
  %v146 = vpack.c.b16 %v114, %v112
  %v147 = vpack.c.b16 %v117, %v115
  %v148 = vpack.c.b16 %v118, %v116
  %v149 = vpack.c.b16 %v121, %v119
  %v150 = vpack.c.b16 %v122, %v120
  %v151 = vpack.c.b16 %v125, %v123
  %v152 = vpack.c.b16 %v126, %v124
  %v153 = vpack.c.b16 %v129, %v127
  %v154 = vpack.c.b16 %v130, %v128
  %v155 = vpack.c.b16 %v133, %v131
  %v156 = vpack.c.b16 %v134, %v132
  %v157 = vpack.c.b16 %v137, %v135
  %v158 = vpack.c.b16 %v138, %v136
  %v159 = vpack.c.b16 %v141, %v139
  %v160 = vpack.c.b16 %v142, %v140
  %v189 = vunpack.c.l.b16 %v63
  %v190 = vunpack.c.l.b16 %v64
  %v191 = vunpack.c.l.b16 %v65
  %v192 = vunpack.c.l.b16 %v66
  %v193 = vunpack.c.l.b16 %v67
  %v194 = vunpack.c.l.b16 %v68
  %v195 = vunpack.c.l.b16 %v69
  %v196 = vunpack.c.l.b16 %v70
  %v197 = vunpack.c.l.b16 %v71
  %v198 = vunpack.c.l.b16 %v72
  %v199 = vunpack.c.l.b16 %v73
  %v200 = vunpack.c.l.b16 %v74
  %v201 = vunpack.c.l.b16 %v75
  %v202 = vunpack.c.l.b16 %v76
  %v203 = vunpack.c.l.b16 %v77
  %v204 = vunpack.c.l.b16 %v78
  %v205 = vunpack.c.l.b16 %v79
  %v206 = vunpack.c.l.b16 %v80
  %v207 = vunpack.c.l.b16 %v81
  %v208 = vpack.c.b16 %v190, %v189
  %v209 = vpack.c.b16 %v192, %v191
  %v210 = vpack.c.b16 %v194, %v193
  %v211 = vpack.c.b16 %v196, %v195
  %v212 = vpack.c.b16 %v198, %v197
  %v213 = vpack.c.b16 %v200, %v199
  %v214 = vpack.c.b16 %v202, %v201
  %v215 = vpack.c.b16 %v204, %v203
  %v216 = vpack.c.b16 %v206, %v205
  %v217 = vpack.c.b16 %v207, %v207
  %vm227 = vcmask 154624
  %v229 = vsel %vm227, %v144, 0
  %v232 = vsel %vm227, %v146, 0
  %v235 = vsel %vm227, %v148, 0
  %v238 = vsel %vm227, %v150, 0
  %v241 = vsel %vm227, %v152, 0
  %v244 = vsel %vm227, %v154, 0
  %v247 = vsel %vm227, %v156, 0
  %v250 = vsel %vm227, %v158, 0
  %v253 = vsel %vm227, %v160, 0
  %vm255 = vcmask 1040384
  %vm256 = vcmask 1041408
  %v257 = vsel %vm255, 4294967295, 65535
  %v258 = vsel %vm256, %v257, 0
  %v260 = vand.u32 %v217, %v258
  %262 = vmatprep.subr.bf16.mxu0 0
  %263 = vmatpush1.bf16.msra.mxu0 %v208
  %264 = vmatprep.subr.bf16.mxu0 0
  %265 = vmatpush1.bf16.msra.mxu0 %v209
  %266 = vmatprep.subr.bf16.mxu0 0
  %267 = vmatpush1.bf16.msra.mxu0 %v210
  %268 = vmatprep.subr.bf16.mxu0 0
  %269 = vmatpush1.bf16.msra.mxu0 %v211
  %270 = vmatprep.subr.bf16.mxu0 0
  %271 = vmatpush1.bf16.msra.mxu0 %v212
  %272 = vmatprep.subr.bf16.mxu0 0
  %273 = vmatpush1.bf16.msra.mxu0 %v213
  %274 = vmatprep.subr.bf16.mxu0 0
  %275 = vmatpush1.bf16.msra.mxu0 %v214
  %276 = vmatprep.subr.bf16.mxu0 0
  %277 = vmatpush1.bf16.msra.mxu0 %v215
  %278 = vmatprep.subr.bf16.mxu0 0
  %279 = vmatpush1.bf16.msra.mxu0 %v216
  %280 = vmatprep.subr.bf16.mxu0 0
  %281 = vmatpush1.bf16.msra.mxu0 %v260
  %282 = vmatprep.subr.bf16.mxu0 0
  %283 = vmatpush1.bf16.msra.mxu0 0
  %284 = vmatprep.subr.bf16.mxu0 0
  %285 = vmatpush1.bf16.msra.mxu0 0
  %286 = vmatprep.subr.bf16.mxu0 0
  %287 = vmatpush1.bf16.msra.mxu0 0
  %288 = vmatprep.subr.bf16.mxu0 0
  %289 = vmatpush1.bf16.msra.mxu0 0
  %290 = vmatprep.subr.bf16.mxu0 0
  %291 = vmatpush1.bf16.msra.mxu0 0
  %292 = vmatprep.subr.bf16.mxu0 0
  %293 = vmatpush1.bf16.msra.mxu0 0
  %294 = vmatprep.mubr.bf16.mxu0 %v229
  %295 = vmatmul.mubr.bf16.gmra.mrb[0].mxu0 %v143
  %v296 = vpop.f32.mrb[0].mxu0
  %v297 = vadd.f32 %v87, %v296
  %v298 = vpop.f32.mrb[0].mxu0
  %v299 = vpop.f32.mrb[0].mxu0
  %v300 = vadd.f32 %v87, %v299
  %v301 = vpop.f32.mrb[0].mxu0
  %302 = vmatprep.mubr.bf16.mxu0 %v232
  %303 = vmatmul.mubr.bf16.gmra.mrb[0].mxu0 %v145
  %v304 = vpop.f32.mrb[0].mxu0
  %v305 = vadd.f32 %v87, %v304
  %v306 = vpop.f32.mrb[0].mxu0
  %v307 = vpop.f32.mrb[0].mxu0
  %v308 = vadd.f32 %v87, %v307
  %v309 = vpop.f32.mrb[0].mxu0
  %310 = vmatprep.mubr.bf16.mxu0 %v235
  %311 = vmatmul.mubr.bf16.gmra.mrb[0].mxu0 %v147
  %v312 = vpop.f32.mrb[0].mxu0
  %v313 = vadd.f32 %v87, %v312
  %v314 = vpop.f32.mrb[0].mxu0
  %v315 = vpop.f32.mrb[0].mxu0
  %v316 = vadd.f32 %v87, %v315
  %v317 = vpop.f32.mrb[0].mxu0
  %318 = vmatprep.mubr.bf16.mxu0 %v238
  %319 = vmatmul.mubr.bf16.gmra.mrb[0].mxu0 %v149
  %v320 = vpop.f32.mrb[0].mxu0
  %v321 = vadd.f32 %v87, %v320
  %v322 = vpop.f32.mrb[0].mxu0
  %v323 = vpop.f32.mrb[0].mxu0
  %v324 = vadd.f32 %v87, %v323
  %v325 = vpop.f32.mrb[0].mxu0
  %326 = vmatprep.mubr.bf16.mxu0 %v241
  %327 = vmatmul.mubr.bf16.gmra.mrb[0].mxu0 %v151
  %v328 = vpop.f32.mrb[0].mxu0
  %v329 = vadd.f32 %v87, %v328
  %v330 = vpop.f32.mrb[0].mxu0
  %v331 = vpop.f32.mrb[0].mxu0
  %v332 = vadd.f32 %v87, %v331
  %v333 = vpop.f32.mrb[0].mxu0
  %334 = vmatprep.mubr.bf16.mxu0 %v244
  %335 = vmatmul.mubr.bf16.gmra.mrb[0].mxu0 %v153
  %v336 = vpop.f32.mrb[0].mxu0
  %v337 = vadd.f32 %v87, %v336
  %v338 = vpop.f32.mrb[0].mxu0
  %v339 = vpop.f32.mrb[0].mxu0
  %v340 = vadd.f32 %v87, %v339
  %v341 = vpop.f32.mrb[0].mxu0
  %342 = vmatprep.mubr.bf16.mxu0 %v247
  %343 = vmatmul.mubr.bf16.gmra.mrb[0].mxu0 %v155
  %v344 = vpop.f32.mrb[0].mxu0
  %v345 = vadd.f32 %v87, %v344
  %v346 = vpop.f32.mrb[0].mxu0
  %v347 = vpop.f32.mrb[0].mxu0
  %v348 = vadd.f32 %v87, %v347
  %v349 = vpop.f32.mrb[0].mxu0
  %350 = vmatprep.mubr.bf16.mxu0 %v250
  %351 = vmatmul.mubr.bf16.gmra.mrb[0].mxu0 %v157
  %v352 = vpop.f32.mrb[0].mxu0
  %v353 = vadd.f32 %v87, %v352
  %v354 = vpop.f32.mrb[0].mxu0
  %v355 = vpop.f32.mrb[0].mxu0
  %v356 = vadd.f32 %v87, %v355
  %v357 = vpop.f32.mrb[0].mxu0
  %358 = vmatprep.mubr.bf16.mxu0 %v253
  %359 = vmatmul.mubr.bf16.gmra.mrb[0].mxu0 %v159
  %v360 = vpop.f32.mrb[0].mxu0
  %v361 = vadd.f32 %v87, %v360
  %v362 = vpop.f32.mrb[0].mxu0
  %v363 = vpop.f32.mrb[0].mxu0
  %v364 = vadd.f32 %v87, %v363
  %v365 = vpop.f32.mrb[0].mxu0
  %366 = vdwg.mxu0
  %v367 = vmax.f32 %v297, 0.0
  %v368 = vmax.f32 %v300, 0.0
  %v369 = vmax.f32 %v305, 0.0
  %v370 = vmax.f32 %v308, 0.0
  %v371 = vmax.f32 %v313, 0.0
  %v372 = vmax.f32 %v316, 0.0
  %v373 = vmax.f32 %v321, 0.0
  %v374 = vmax.f32 %v324, 0.0
  %v375 = vmax.f32 %v329, 0.0
  %v376 = vmax.f32 %v332, 0.0
  %v377 = vmax.f32 %v337, 0.0
  %v378 = vmax.f32 %v340, 0.0
  %v379 = vmax.f32 %v345, 0.0
  %v380 = vmax.f32 %v348, 0.0
  %v381 = vmax.f32 %v353, 0.0
  %v382 = vmax.f32 %v356, 0.0
  %v383 = vmax.f32 %v361, 0.0
  %v384 = vmax.f32 %v364, 0.0
  %vm385 = vcmask 130048
  %v386 = vsel %vm385, %v367, -inf
  %v387 = vsel %vm385, %v369, -inf
  %v388 = vsel %vm385, %v371, -inf
  %v389 = vmax.f32 %v386, %v388
  %v390 = vsel %vm385, %v373, -inf
  %v391 = vmax.f32 %v387, %v390
  %v392 = vsel %vm385, %v375, -inf
  %v393 = vmax.f32 %v389, %v392
  %v394 = vsel %vm385, %v377, -inf
  %v395 = vmax.f32 %v391, %v394
  %v396 = vsel %vm385, %v379, -inf
  %v397 = vmax.f32 %v393, %v396
  %v398 = vsel %vm385, %v381, -inf
  %v399 = vmax.f32 %v395, %v398
  %v400 = vsel %vm385, %v383, -inf
  %v401 = vmax.f32 %v397, %v400
  %v402 = vmax.f32 %v401, %v399
  %v403 = vsel %vm385, %v368, -inf
  %v404 = vsel %vm385, %v370, -inf
  %v405 = vsel %vm385, %v372, -inf
  %v406 = vmax.f32 %v403, %v405
  %v407 = vsel %vm385, %v374, -inf
  %v408 = vmax.f32 %v404, %v407
  %v409 = vsel %vm385, %v376, -inf
  %v410 = vmax.f32 %v406, %v409
  %v411 = vsel %vm385, %v378, -inf
  %v412 = vmax.f32 %v408, %v411
  %v413 = vsel %vm385, %v380, -inf
  %v414 = vmax.f32 %v410, %v413
  %v415 = vsel %vm385, %v382, -inf
  %v416 = vmax.f32 %v412, %v415
  %v417 = vsel %vm385, %v384, -inf
  %v418 = vmax.f32 %v414, %v417
  %v419 = vmax.f32 %v418, %v416
  %v420 = vld [vmem:[%s3] sm:$0xff]
  %v421 = vld [vmem:[%s3 + $0x8] sm:$0xff]
  %v422 = vld [vmem:[%s3 + $0x10] sm:$0xff]
  %v423 = vld [vmem:[%s3 + $0x18] sm:$0xff]
  %v424 = vld [vmem:[%s3 + $0x20] sm:$0xff]
  %v425 = vld [vmem:[%s3 + $0x28] sm:$0xff]
  %v426 = vld [vmem:[%s3 + $0x30] sm:$0xff]
  %v427 = vld [vmem:[%s3 + $0x38] sm:$0xff]
  %v428 = vld [vmem:[%s4] sm:$0xf]
  %v429 = vld [vmem:[%s4 + $0x4] sm:$0xf]
  %v430 = vld [vmem:[%s4 + $0x8] sm:$0xf]
  %v431 = vld [vmem:[%s4 + $0xc] sm:$0xf]
  %v432 = vld [vmem:[%s4 + $0x10] sm:$0xf]
  %v433 = vld [vmem:[%s4 + $0x14] sm:$0xf]
  %v434 = vld [vmem:[%s4 + $0x18] sm:$0xf]
  %v435 = vld [vmem:[%s4 + $0x1c] sm:$0xf]
  %v436 = vld [vmem:[%s4 + $0x20] sm:$0xf]
  %v437 = vld [vmem:[%s4 + $0x24] sm:$0xf]
  %v438 = vld [vmem:[%s4 + $0x28] sm:$0xf]
  %v439 = vld [vmem:[%s4 + $0x2c] sm:$0xf]
  %v440 = vld [vmem:[%s4 + $0x30] sm:$0xf]
  %v441 = vld [vmem:[%s4 + $0x34] sm:$0xf]
  %v442 = vld [vmem:[%s4 + $0x38] sm:$0xf]
  %v443 = vld [vmem:[%s4 + $0x3c] sm:$0xf]
  %v444 = vld [vmem:[%s4 + $0x40] sm:$0xf]
  %v445 = vld [vmem:[%s4 + $0x44] sm:$0xf]
  %v446 = vld [vmem:[%s4 + $0x48] sm:$0xf]
  %v447 = vld [vmem:[%s4 + $0x4c] sm:$0xf]
  %v448 = vld [vmem:[%s4 + $0x50] sm:$0xf]
  %v449 = vld [vmem:[%s4 + $0x54] sm:$0xf]
  %v450 = vld [vmem:[%s4 + $0x58] sm:$0xf]
  %v451 = vld [vmem:[%s4 + $0x5c] sm:$0xf]
  %v452 = vld [vmem:[%s4 + $0x60] sm:$0xf]
  %v453 = vld [vmem:[%s4 + $0x64] sm:$0xf]
  %v454 = vld [vmem:[%s4 + $0x68] sm:$0xf]
  %v455 = vld [vmem:[%s4 + $0x6c] sm:$0xf]
  %v456 = vld [vmem:[%s4 + $0x70] sm:$0xf]
  %v457 = vld [vmem:[%s4 + $0x74] sm:$0xf]
  %v458 = vld [vmem:[%s4 + $0x78] sm:$0x3]
  %v459 = vld [vmem:[%s5] sm:$0x1]
  %v461 = vlaneseq
  %v462 = vshrl.u32 %v461, 7
  %v463 = vsub.s32 0, %v462
  %v464 = vrot.slane %v459, %v463
  %v474 = vunpack.c.l.b16 %v420
  %v475 = vunpack.c.h.b16 %v420
  %v476 = vunpack.c.l.b16 %v421
  %v477 = vunpack.c.h.b16 %v421
  %v478 = vunpack.c.l.b16 %v422
  %v479 = vunpack.c.h.b16 %v422
  %v480 = vunpack.c.l.b16 %v423
  %v481 = vunpack.c.h.b16 %v423
  %v482 = vunpack.c.l.b16 %v424
  %v483 = vunpack.c.h.b16 %v424
  %v484 = vunpack.c.l.b16 %v425
  %v485 = vunpack.c.h.b16 %v425
  %v486 = vunpack.c.l.b16 %v426
  %v487 = vunpack.c.h.b16 %v426
  %v488 = vunpack.c.l.b16 %v427
  %v489 = vunpack.c.h.b16 %v427
  %v490 = vpack.c.b16 %v476, %v474
  %v491 = vpack.c.b16 %v477, %v475
  %v492 = vpack.c.b16 %v480, %v478
  %v493 = vpack.c.b16 %v481, %v479
  %v494 = vpack.c.b16 %v484, %v482
  %v495 = vpack.c.b16 %v485, %v483
  %v496 = vpack.c.b16 %v488, %v486
  %v497 = vpack.c.b16 %v489, %v487
  %v533 = vunpack.c.l.b16 %v428
  %v534 = vunpack.c.l.b16 %v429
  %v535 = vunpack.c.l.b16 %v430
  %v536 = vunpack.c.l.b16 %v431
  %v537 = vunpack.c.l.b16 %v432
  %v538 = vunpack.c.l.b16 %v433
  %v539 = vunpack.c.l.b16 %v434
  %v540 = vunpack.c.l.b16 %v435
  %v541 = vunpack.c.l.b16 %v436
  %v542 = vunpack.c.l.b16 %v437
  %v543 = vunpack.c.l.b16 %v438
  %v544 = vunpack.c.l.b16 %v439
  %v545 = vunpack.c.l.b16 %v440
  %v546 = vunpack.c.l.b16 %v441
  %v547 = vunpack.c.l.b16 %v442
  %v548 = vunpack.c.l.b16 %v443
  %v549 = vunpack.c.l.b16 %v444
  %v550 = vunpack.c.l.b16 %v445
  %v551 = vunpack.c.l.b16 %v446
  %v552 = vunpack.c.l.b16 %v447
  %v553 = vunpack.c.l.b16 %v448
  %v554 = vunpack.c.l.b16 %v449
  %v555 = vunpack.c.l.b16 %v450
  %v556 = vunpack.c.l.b16 %v451
  %v557 = vunpack.c.l.b16 %v452
  %v558 = vunpack.c.l.b16 %v453
  %v559 = vunpack.c.l.b16 %v454
  %v560 = vunpack.c.l.b16 %v455
  %v561 = vunpack.c.l.b16 %v456
  %v562 = vunpack.c.l.b16 %v457
  %v563 = vunpack.c.l.b16 %v458
  %v564 = vpack.c.b16 %v534, %v533
  %v565 = vpack.c.b16 %v536, %v535
  %v566 = vpack.c.b16 %v538, %v537
  %v567 = vpack.c.b16 %v540, %v539
  %v568 = vpack.c.b16 %v542, %v541
  %v569 = vpack.c.b16 %v544, %v543
  %v570 = vpack.c.b16 %v546, %v545
  %v571 = vpack.c.b16 %v548, %v547
  %v572 = vpack.c.b16 %v550, %v549
  %v573 = vpack.c.b16 %v552, %v551
  %v574 = vpack.c.b16 %v554, %v553
  %v575 = vpack.c.b16 %v556, %v555
  %v576 = vpack.c.b16 %v558, %v557
  %v577 = vpack.c.b16 %v560, %v559
  %v578 = vpack.c.b16 %v562, %v561
  %v579 = vpack.c.b16 %v563, %v563
  %vm595 = vcmask 941056
  %v597 = vsel %vm595, %v491, 0
  %v600 = vsel %vm595, %v493, 0
  %v603 = vsel %vm595, %v495, 0
  %v606 = vsel %vm595, %v497, 0
  %v609 = vand.u32 %v579, %v258
  %611 = vmatprep.subr.bf16.mxu0 0
  %612 = vmatpush1.bf16.msra.mxu0 %v564
  %613 = vmatprep.subr.bf16.mxu0 0
  %614 = vmatpush1.bf16.msra.mxu0 %v565
  %615 = vmatprep.subr.bf16.mxu0 0
  %616 = vmatpush1.bf16.msra.mxu0 %v566
  %617 = vmatprep.subr.bf16.mxu0 0
  %618 = vmatpush1.bf16.msra.mxu0 %v567
  %619 = vmatprep.subr.bf16.mxu0 0
  %620 = vmatpush1.bf16.msra.mxu0 %v568
  %621 = vmatprep.subr.bf16.mxu0 0
  %622 = vmatpush1.bf16.msra.mxu0 %v569
  %623 = vmatprep.subr.bf16.mxu0 0
  %624 = vmatpush1.bf16.msra.mxu0 %v570
  %625 = vmatprep.subr.bf16.mxu0 0
  %626 = vmatpush1.bf16.msra.mxu0 %v571
  %627 = vmatprep.subr.bf16.mxu0 0
  %628 = vmatpush1.bf16.msra.mxu0 %v572
  %629 = vmatprep.subr.bf16.mxu0 0
  %630 = vmatpush1.bf16.msra.mxu0 %v573
  %631 = vmatprep.subr.bf16.mxu0 0
  %632 = vmatpush1.bf16.msra.mxu0 %v574
  %633 = vmatprep.subr.bf16.mxu0 0
  %634 = vmatpush1.bf16.msra.mxu0 %v575
  %635 = vmatprep.subr.bf16.mxu0 0
  %636 = vmatpush1.bf16.msra.mxu0 %v576
  %637 = vmatprep.subr.bf16.mxu0 0
  %638 = vmatpush1.bf16.msra.mxu0 %v577
  %639 = vmatprep.subr.bf16.mxu0 0
  %640 = vmatpush1.bf16.msra.mxu0 %v578
  %641 = vmatprep.subr.bf16.mxu0 0
  %642 = vmatpush1.bf16.msra.mxu0 %v609
  %643 = vmatprep.mubr.bf16.mxu0 %v597
  %644 = vmatmul.mubr.bf16.gmra.mrb[0].mxu0 %v490
  %v645 = vpop.f32.mrb[0].mxu0
  %v646 = vadd.f32 %v464, %v645
  %v647 = vpop.f32.mrb[0].mxu0
  %v648 = vpop.f32.mrb[0].mxu0
  %v649 = vadd.f32 %v464, %v648
  %v650 = vpop.f32.mrb[0].mxu0
  %651 = vmatprep.mubr.bf16.mxu0 %v600
  %652 = vmatmul.mubr.bf16.gmra.mrb[0].mxu0 %v492
  %v653 = vpop.f32.mrb[0].mxu0
  %v654 = vadd.f32 %v464, %v653
  %v655 = vpop.f32.mrb[0].mxu0
  %v656 = vpop.f32.mrb[0].mxu0
  %v657 = vadd.f32 %v464, %v656
  %v658 = vpop.f32.mrb[0].mxu0
  %659 = vmatprep.mubr.bf16.mxu0 %v603
  %660 = vmatmul.mubr.bf16.gmra.mrb[0].mxu0 %v494
  %v661 = vpop.f32.mrb[0].mxu0
  %v662 = vadd.f32 %v464, %v661
  %v663 = vpop.f32.mrb[0].mxu0
  %v664 = vpop.f32.mrb[0].mxu0
  %v665 = vadd.f32 %v464, %v664
  %v666 = vpop.f32.mrb[0].mxu0
  %667 = vmatprep.mubr.bf16.mxu0 %v606
  %668 = vmatmul.mubr.bf16.gmra.mrb[0].mxu0 %v496
  %v669 = vpop.f32.mrb[0].mxu0
  %v670 = vadd.f32 %v464, %v669
  %v671 = vpop.f32.mrb[0].mxu0
  %v672 = vpop.f32.mrb[0].mxu0
  %v673 = vadd.f32 %v464, %v672
  %v674 = vpop.f32.mrb[0].mxu0
  %675 = vdwg.mxu0
  %v676 = vmax.f32 %v646, 0.0
  %v677 = vmax.f32 %v649, 0.0
  %v678 = vmax.f32 %v654, 0.0
  %v679 = vmax.f32 %v657, 0.0
  %v680 = vmax.f32 %v662, 0.0
  %v681 = vmax.f32 %v665, 0.0
  %v682 = vmax.f32 %v670, 0.0
  %v683 = vmax.f32 %v673, 0.0
  %v684 = vsel %vm385, %v676, -inf
  %v685 = vsel %vm385, %v678, -inf
  %v686 = vsel %vm385, %v680, -inf
  %v687 = vmax.f32 %v684, %v686
  %v688 = vsel %vm385, %v682, -inf
  %v689 = vmax.f32 %v685, %v688
  %v690 = vmax.f32 %v687, %v689
  %v691 = vsel %vm385, %v677, -inf
  %v692 = vsel %vm385, %v679, -inf
  %v693 = vsel %vm385, %v681, -inf
  %v694 = vmax.f32 %v691, %v693
  %v695 = vsel %vm385, %v683, -inf
  %v696 = vmax.f32 %v692, %v695
  %v697 = vmax.f32 %v694, %v696
  %v698 = vld [vmem:[%s6] sm:$0xf]
  %v699 = vld [vmem:[%s6 + $0x4] sm:$0xf]
  %v700 = vld [vmem:[%s6 + $0x8] sm:$0xf]
  %v701 = vld [vmem:[%s6 + $0xc] sm:$0xf]
  %v702 = vld [vmem:[%s6 + $0x10] sm:$0xf]
  %v703 = vld [vmem:[%s6 + $0x14] sm:$0xf]
  %v704 = vld [vmem:[%s6 + $0x18] sm:$0xf]
  %v705 = vld [vmem:[%s6 + $0x1c] sm:$0xf]
  %v706 = vld [vmem:[%s6 + $0x20] sm:$0xf]
  %v707 = vld [vmem:[%s6 + $0x24] sm:$0xf]
  %v708 = vld [vmem:[%s6 + $0x28] sm:$0xf]
  %v709 = vld [vmem:[%s6 + $0x2c] sm:$0xf]
  %v710 = vld [vmem:[%s6 + $0x30] sm:$0xf]
  %v711 = vld [vmem:[%s6 + $0x34] sm:$0xf]
  %v712 = vld [vmem:[%s6 + $0x38] sm:$0xf]
  %v713 = vld [vmem:[%s6 + $0x3c] sm:$0xf]
  %v714 = vld [vmem:[%s6 + $0x40] sm:$0xf]
  %v715 = vld [vmem:[%s6 + $0x44] sm:$0xf]
  %v716 = vld [vmem:[%s6 + $0x48] sm:$0xf]
  %v717 = vld [vmem:[%s6 + $0x4c] sm:$0xf]
  %v718 = vld [vmem:[%s6 + $0x50] sm:$0xf]
  %v719 = vld [vmem:[%s6 + $0x54] sm:$0xf]
  %v720 = vld [vmem:[%s6 + $0x58] sm:$0xf]
  %v721 = vld [vmem:[%s6 + $0x5c] sm:$0xf]
  %v722 = vld [vmem:[%s6 + $0x60] sm:$0xf]
  %v723 = vld [vmem:[%s6 + $0x64] sm:$0xf]
  %v724 = vld [vmem:[%s6 + $0x68] sm:$0xf]
  %v725 = vld [vmem:[%s6 + $0x6c] sm:$0xf]
  %v726 = vld [vmem:[%s6 + $0x70] sm:$0xf]
  %v727 = vld [vmem:[%s6 + $0x74] sm:$0xf]
  %v728 = vld [vmem:[%s6 + $0x78] sm:$0xf]
  %v729 = vld [vmem:[%s6 + $0x7c] sm:$0xf]
  %v730 = vld [vmem:[%s7] sm:$0xf]
  %v731 = vld [vmem:[%s7 + $0x4] sm:$0xf]
  %v732 = vld [vmem:[%s7 + $0x8] sm:$0xf]
  %v733 = vld [vmem:[%s7 + $0xc] sm:$0xf]
  %v734 = vld [vmem:[%s7 + $0x10] sm:$0xf]
  %v735 = vld [vmem:[%s7 + $0x14] sm:$0xf]
  %v736 = vld [vmem:[%s7 + $0x18] sm:$0xf]
  %v737 = vld [vmem:[%s7 + $0x1c] sm:$0xf]
  %v738 = vld [vmem:[%s7 + $0x20] sm:$0xf]
  %v739 = vld [vmem:[%s7 + $0x24] sm:$0x3]
  %v740 = vld [vmem:[%s8] sm:$0x1]
  %v742 = vlaneseq
  %v743 = vshrl.u32 %v742, 7
  %v744 = vsub.s32 0, %v743
  %v745 = vrot.slane %v740, %v744
  %v779 = vunpack.c.l.b16 %v698
  %v780 = vunpack.c.l.b16 %v699
  %v781 = vunpack.c.l.b16 %v700
  %v782 = vunpack.c.l.b16 %v701
  %v783 = vunpack.c.l.b16 %v702
  %v784 = vunpack.c.l.b16 %v703
  %v785 = vunpack.c.l.b16 %v704
  %v786 = vunpack.c.l.b16 %v705
  %v787 = vunpack.c.l.b16 %v706
  %v788 = vunpack.c.l.b16 %v707
  %v789 = vunpack.c.l.b16 %v708
  %v790 = vunpack.c.l.b16 %v709
  %v791 = vunpack.c.l.b16 %v710
  %v792 = vunpack.c.l.b16 %v711
  %v793 = vunpack.c.l.b16 %v712
  %v794 = vunpack.c.l.b16 %v713
  %v795 = vunpack.c.l.b16 %v714
  %v796 = vunpack.c.l.b16 %v715
  %v797 = vunpack.c.l.b16 %v716
  %v798 = vunpack.c.l.b16 %v717
  %v799 = vunpack.c.l.b16 %v718
  %v800 = vunpack.c.l.b16 %v719
  %v801 = vunpack.c.l.b16 %v720
  %v802 = vunpack.c.l.b16 %v721
  %v803 = vunpack.c.l.b16 %v722
  %v804 = vunpack.c.l.b16 %v723
  %v805 = vunpack.c.l.b16 %v724
  %v806 = vunpack.c.l.b16 %v725
  %v807 = vunpack.c.l.b16 %v726
  %v808 = vunpack.c.l.b16 %v727
  %v809 = vunpack.c.l.b16 %v728
  %v810 = vunpack.c.l.b16 %v729
  %v811 = vpack.c.b16 %v780, %v779
  %v812 = vpack.c.b16 %v782, %v781
  %v813 = vpack.c.b16 %v784, %v783
  %v814 = vpack.c.b16 %v786, %v785
  %v815 = vpack.c.b16 %v788, %v787
  %v816 = vpack.c.b16 %v790, %v789
  %v817 = vpack.c.b16 %v792, %v791
  %v818 = vpack.c.b16 %v794, %v793
  %v819 = vpack.c.b16 %v796, %v795
  %v820 = vpack.c.b16 %v798, %v797
  %v821 = vpack.c.b16 %v800, %v799
  %v822 = vpack.c.b16 %v802, %v801
  %v823 = vpack.c.b16 %v804, %v803
  %v824 = vpack.c.b16 %v806, %v805
  %v825 = vpack.c.b16 %v808, %v807
  %v826 = vpack.c.b16 %v810, %v809
  %v837 = vunpack.c.l.b16 %v730
  %v838 = vunpack.c.l.b16 %v731
  %v839 = vunpack.c.l.b16 %v732
  %v840 = vunpack.c.l.b16 %v733
  %v841 = vunpack.c.l.b16 %v734
  %v842 = vunpack.c.l.b16 %v735
  %v843 = vunpack.c.l.b16 %v736
  %v844 = vunpack.c.l.b16 %v737
  %v845 = vunpack.c.l.b16 %v738
  %v846 = vunpack.c.l.b16 %v739
  %v847 = vpack.c.b16 %v838, %v837
  %v848 = vpack.c.b16 %v840, %v839
  %v849 = vpack.c.b16 %v842, %v841
  %v850 = vpack.c.b16 %v844, %v843
  %v851 = vpack.c.b16 %v846, %v845
  %vm856 = vcmask 613376
  %v858 = vsel %vm856, %v811, 0
  %v861 = vsel %vm856, %v812, 0
  %v864 = vsel %vm856, %v813, 0
  %v867 = vsel %vm856, %v814, 0
  %v870 = vsel %vm856, %v815, 0
  %v873 = vsel %vm856, %v816, 0
  %v876 = vsel %vm856, %v817, 0
  %v879 = vsel %vm856, %v818, 0
  %v882 = vsel %vm856, %v819, 0
  %v885 = vsel %vm856, %v820, 0
  %v888 = vsel %vm856, %v821, 0
  %v891 = vsel %vm856, %v822, 0
  %v894 = vsel %vm856, %v823, 0
  %v897 = vsel %vm856, %v824, 0
  %v900 = vsel %vm856, %v825, 0
  %v903 = vsel %vm856, %v826, 0
  %vm905 = vcmask 1044480
  %vm906 = vcmask 1045504
  %v907 = vsel %vm905, 4294967295, 65535
  %v908 = vsel %vm906, %v907, 0
  %v910 = vand.u32 %v851, %v908
  %912 = vmatprep.subr.bf16.mxu0 0
  %913 = vmatpush1.bf16.msra.mxu0 %v847
  %914 = vmatprep.subr.bf16.mxu0 0
  %915 = vmatpush1.bf16.msra.mxu0 %v848
  %916 = vmatprep.subr.bf16.mxu0 0
  %917 = vmatpush1.bf16.msra.mxu0 %v849
  %918 = vmatprep.subr.bf16.mxu0 0
  %919 = vmatpush1.bf16.msra.mxu0 %v850
  %920 = vmatprep.subr.bf16.mxu0 0
  %921 = vmatpush1.bf16.msra.mxu0 %v910
  %922 = vmatprep.subr.bf16.mxu0 0
  %923 = vmatpush1.bf16.msra.mxu0 0
  %924 = vmatprep.subr.bf16.mxu0 0
  %925 = vmatpush1.bf16.msra.mxu0 0
  %926 = vmatprep.subr.bf16.mxu0 0
  %927 = vmatpush1.bf16.msra.mxu0 0
  %928 = vmatprep.subr.bf16.mxu0 0
  %929 = vmatpush1.bf16.msra.mxu0 0
  %930 = vmatprep.subr.bf16.mxu0 0
  %931 = vmatpush1.bf16.msra.mxu0 0
  %932 = vmatprep.subr.bf16.mxu0 0
  %933 = vmatpush1.bf16.msra.mxu0 0
  %934 = vmatprep.subr.bf16.mxu0 0
  %935 = vmatpush1.bf16.msra.mxu0 0
  %936 = vmatprep.subr.bf16.mxu0 0
  %937 = vmatpush1.bf16.msra.mxu0 0
  %938 = vmatprep.subr.bf16.mxu0 0
  %939 = vmatpush1.bf16.msra.mxu0 0
  %940 = vmatprep.subr.bf16.mxu0 0
  %941 = vmatpush1.bf16.msra.mxu0 0
  %942 = vmatprep.subr.bf16.mxu0 0
  %943 = vmatpush1.bf16.msra.mxu0 0
  %944 = vmatprep.mubr.bf16.mxu0 0
  %945 = vmatmul.mubr.bf16.gmra.mrb[0].mxu0 %v858
  %v946 = vpop.f32.mrb[0].mxu0
  %v947 = vadd.f32 %v745, %v946
  %v948 = vpop.f32.mrb[0].mxu0
  %v949 = vpop.f32.mrb[0].mxu0
  %v950 = vadd.f32 %v745, %v949
  %v951 = vpop.f32.mrb[0].mxu0
  %952 = vmatprep.mubr.bf16.mxu0 0
  %953 = vmatmul.mubr.bf16.gmra.mrb[0].mxu0 %v861
  %v954 = vpop.f32.mrb[0].mxu0
  %v955 = vadd.f32 %v745, %v954
  %v956 = vpop.f32.mrb[0].mxu0
  %v957 = vpop.f32.mrb[0].mxu0
  %v958 = vadd.f32 %v745, %v957
  %v959 = vpop.f32.mrb[0].mxu0
  %960 = vmatprep.mubr.bf16.mxu0 0
  %961 = vmatmul.mubr.bf16.gmra.mrb[0].mxu0 %v864
  %v962 = vpop.f32.mrb[0].mxu0
  %v963 = vadd.f32 %v745, %v962
  %v964 = vpop.f32.mrb[0].mxu0
  %v965 = vpop.f32.mrb[0].mxu0
  %v966 = vadd.f32 %v745, %v965
  %v967 = vpop.f32.mrb[0].mxu0
  %968 = vmatprep.mubr.bf16.mxu0 0
  %969 = vmatmul.mubr.bf16.gmra.mrb[0].mxu0 %v867
  %v970 = vpop.f32.mrb[0].mxu0
  %v971 = vadd.f32 %v745, %v970
  %v972 = vpop.f32.mrb[0].mxu0
  %v973 = vpop.f32.mrb[0].mxu0
  %v974 = vadd.f32 %v745, %v973
  %v975 = vpop.f32.mrb[0].mxu0
  %976 = vmatprep.mubr.bf16.mxu0 0
  %977 = vmatmul.mubr.bf16.gmra.mrb[0].mxu0 %v870
  %v978 = vpop.f32.mrb[0].mxu0
  %v979 = vadd.f32 %v745, %v978
  %v980 = vpop.f32.mrb[0].mxu0
  %v981 = vpop.f32.mrb[0].mxu0
  %v982 = vadd.f32 %v745, %v981
  %v983 = vpop.f32.mrb[0].mxu0
  %984 = vmatprep.mubr.bf16.mxu0 0
  %985 = vmatmul.mubr.bf16.gmra.mrb[0].mxu0 %v873
  %v986 = vpop.f32.mrb[0].mxu0
  %v987 = vadd.f32 %v745, %v986
  %v988 = vpop.f32.mrb[0].mxu0
  %v989 = vpop.f32.mrb[0].mxu0
  %v990 = vadd.f32 %v745, %v989
  %v991 = vpop.f32.mrb[0].mxu0
  %992 = vmatprep.mubr.bf16.mxu0 0
  %993 = vmatmul.mubr.bf16.gmra.mrb[0].mxu0 %v876
  %v994 = vpop.f32.mrb[0].mxu0
  %v995 = vadd.f32 %v745, %v994
  %v996 = vpop.f32.mrb[0].mxu0
  %v997 = vpop.f32.mrb[0].mxu0
  %v998 = vadd.f32 %v745, %v997
  %v999 = vpop.f32.mrb[0].mxu0
  %1000 = vmatprep.mubr.bf16.mxu0 0
  %1001 = vmatmul.mubr.bf16.gmra.mrb[0].mxu0 %v879
  %v1002 = vpop.f32.mrb[0].mxu0
  %v1003 = vadd.f32 %v745, %v1002
  %v1004 = vpop.f32.mrb[0].mxu0
  %v1005 = vpop.f32.mrb[0].mxu0
  %v1006 = vadd.f32 %v745, %v1005
  %v1007 = vpop.f32.mrb[0].mxu0
  %1008 = vmatprep.mubr.bf16.mxu0 0
  %1009 = vmatmul.mubr.bf16.gmra.mrb[0].mxu0 %v882
  %v1010 = vpop.f32.mrb[0].mxu0
  %v1011 = vadd.f32 %v745, %v1010
  %v1012 = vpop.f32.mrb[0].mxu0
  %v1013 = vpop.f32.mrb[0].mxu0
  %v1014 = vadd.f32 %v745, %v1013
  %v1015 = vpop.f32.mrb[0].mxu0
  %1016 = vmatprep.mubr.bf16.mxu0 0
  %1017 = vmatmul.mubr.bf16.gmra.mrb[0].mxu0 %v885
  %v1018 = vpop.f32.mrb[0].mxu0
  %v1019 = vadd.f32 %v745, %v1018
  %v1020 = vpop.f32.mrb[0].mxu0
  %v1021 = vpop.f32.mrb[0].mxu0
  %v1022 = vadd.f32 %v745, %v1021
  %v1023 = vpop.f32.mrb[0].mxu0
  %1024 = vmatprep.mubr.bf16.mxu0 0
  %1025 = vmatmul.mubr.bf16.gmra.mrb[0].mxu0 %v888
  %v1026 = vpop.f32.mrb[0].mxu0
  %v1027 = vadd.f32 %v745, %v1026
  %v1028 = vpop.f32.mrb[0].mxu0
  %v1029 = vpop.f32.mrb[0].mxu0
  %v1030 = vadd.f32 %v745, %v1029
  %v1031 = vpop.f32.mrb[0].mxu0
  %1032 = vmatprep.mubr.bf16.mxu0 0
  %1033 = vmatmul.mubr.bf16.gmra.mrb[0].mxu0 %v891
  %v1034 = vpop.f32.mrb[0].mxu0
  %v1035 = vadd.f32 %v745, %v1034
  %v1036 = vpop.f32.mrb[0].mxu0
  %v1037 = vpop.f32.mrb[0].mxu0
  %v1038 = vadd.f32 %v745, %v1037
  %v1039 = vpop.f32.mrb[0].mxu0
  %1040 = vmatprep.mubr.bf16.mxu0 0
  %1041 = vmatmul.mubr.bf16.gmra.mrb[0].mxu0 %v894
  %v1042 = vpop.f32.mrb[0].mxu0
  %v1043 = vadd.f32 %v745, %v1042
  %v1044 = vpop.f32.mrb[0].mxu0
  %v1045 = vpop.f32.mrb[0].mxu0
  %v1046 = vadd.f32 %v745, %v1045
  %v1047 = vpop.f32.mrb[0].mxu0
  %1048 = vmatprep.mubr.bf16.mxu0 0
  %1049 = vmatmul.mubr.bf16.gmra.mrb[0].mxu0 %v897
  %v1050 = vpop.f32.mrb[0].mxu0
  %v1051 = vadd.f32 %v745, %v1050
  %v1052 = vpop.f32.mrb[0].mxu0
  %v1053 = vpop.f32.mrb[0].mxu0
  %v1054 = vadd.f32 %v745, %v1053
  %v1055 = vpop.f32.mrb[0].mxu0
  %1056 = vmatprep.mubr.bf16.mxu0 0
  %1057 = vmatmul.mubr.bf16.gmra.mrb[0].mxu0 %v900
  %v1058 = vpop.f32.mrb[0].mxu0
  %v1059 = vadd.f32 %v745, %v1058
  %v1060 = vpop.f32.mrb[0].mxu0
  %v1061 = vpop.f32.mrb[0].mxu0
  %v1062 = vadd.f32 %v745, %v1061
  %v1063 = vpop.f32.mrb[0].mxu0
  %1064 = vmatprep.mubr.bf16.mxu0 0
  %1065 = vmatmul.mubr.bf16.gmra.mrb[0].mxu0 %v903
  %v1066 = vpop.f32.mrb[0].mxu0
  %v1067 = vadd.f32 %v745, %v1066
  %v1068 = vpop.f32.mrb[0].mxu0
  %v1069 = vpop.f32.mrb[0].mxu0
  %v1070 = vadd.f32 %v745, %v1069
  %v1071 = vpop.f32.mrb[0].mxu0
  %1072 = vdwg.mxu0
  %v1073 = vmax.f32 %v947, 0.0
  %v1074 = vmax.f32 %v950, 0.0
  %v1075 = vmax.f32 %v955, 0.0
  %v1076 = vmax.f32 %v958, 0.0
  %v1077 = vmax.f32 %v963, 0.0
  %v1078 = vmax.f32 %v966, 0.0
  %v1079 = vmax.f32 %v971, 0.0
  %v1080 = vmax.f32 %v974, 0.0
  %v1081 = vmax.f32 %v979, 0.0
  %v1082 = vmax.f32 %v982, 0.0
  %v1083 = vmax.f32 %v987, 0.0
  %v1084 = vmax.f32 %v990, 0.0
  %v1085 = vmax.f32 %v995, 0.0
  %v1086 = vmax.f32 %v998, 0.0
  %v1087 = vmax.f32 %v1003, 0.0
  %v1088 = vmax.f32 %v1006, 0.0
  %v1089 = vmax.f32 %v1011, 0.0
  %v1090 = vmax.f32 %v1014, 0.0
  %v1091 = vmax.f32 %v1019, 0.0
  %v1092 = vmax.f32 %v1022, 0.0
  %v1093 = vmax.f32 %v1027, 0.0
  %v1094 = vmax.f32 %v1030, 0.0
  %v1095 = vmax.f32 %v1035, 0.0
  %v1096 = vmax.f32 %v1038, 0.0
  %v1097 = vmax.f32 %v1043, 0.0
  %v1098 = vmax.f32 %v1046, 0.0
  %v1099 = vmax.f32 %v1051, 0.0
  %v1100 = vmax.f32 %v1054, 0.0
  %v1101 = vmax.f32 %v1059, 0.0
  %v1102 = vmax.f32 %v1062, 0.0
  %v1103 = vmax.f32 %v1067, 0.0
  %v1104 = vmax.f32 %v1070, 0.0
  %v1105 = vsel %vm385, %v1073, -inf
  %v1106 = vsel %vm385, %v1075, -inf
  %v1107 = vsel %vm385, %v1077, -inf
  %v1108 = vmax.f32 %v1105, %v1107
  %v1109 = vsel %vm385, %v1079, -inf
  %v1110 = vmax.f32 %v1106, %v1109
  %v1111 = vsel %vm385, %v1081, -inf
  %v1112 = vmax.f32 %v1108, %v1111
  %v1113 = vsel %vm385, %v1083, -inf
  %v1114 = vmax.f32 %v1110, %v1113
  %v1115 = vsel %vm385, %v1085, -inf
  %v1116 = vmax.f32 %v1112, %v1115
  %v1117 = vsel %vm385, %v1087, -inf
  %v1118 = vmax.f32 %v1114, %v1117
  %v1119 = vsel %vm385, %v1089, -inf
  %v1120 = vmax.f32 %v1116, %v1119
  %v1121 = vsel %vm385, %v1091, -inf
  %v1122 = vmax.f32 %v1118, %v1121
  %v1123 = vsel %vm385, %v1093, -inf
  %v1124 = vmax.f32 %v1120, %v1123
  %v1125 = vsel %vm385, %v1095, -inf
  %v1126 = vmax.f32 %v1122, %v1125
  %v1127 = vsel %vm385, %v1097, -inf
  %v1128 = vmax.f32 %v1124, %v1127
  %v1129 = vsel %vm385, %v1099, -inf
  %v1130 = vmax.f32 %v1126, %v1129
  %v1131 = vsel %vm385, %v1101, -inf
  %v1132 = vmax.f32 %v1128, %v1131
  %v1133 = vsel %vm385, %v1103, -inf
  %v1134 = vmax.f32 %v1130, %v1133
  %v1135 = vmax.f32 %v1132, %v1134
  %v1136 = vsel %vm385, %v1074, -inf
  %v1137 = vsel %vm385, %v1076, -inf
  %v1138 = vsel %vm385, %v1078, -inf
  %v1139 = vmax.f32 %v1136, %v1138
  %v1140 = vsel %vm385, %v1080, -inf
  %v1141 = vmax.f32 %v1137, %v1140
  %v1142 = vsel %vm385, %v1082, -inf
  %v1143 = vmax.f32 %v1139, %v1142
  %v1144 = vsel %vm385, %v1084, -inf
  %v1145 = vmax.f32 %v1141, %v1144
  %v1146 = vsel %vm385, %v1086, -inf
  %v1147 = vmax.f32 %v1143, %v1146
  %v1148 = vsel %vm385, %v1088, -inf
  %v1149 = vmax.f32 %v1145, %v1148
  %v1150 = vsel %vm385, %v1090, -inf
  %v1151 = vmax.f32 %v1147, %v1150
  %v1152 = vsel %vm385, %v1092, -inf
  %v1153 = vmax.f32 %v1149, %v1152
  %v1154 = vsel %vm385, %v1094, -inf
  %v1155 = vmax.f32 %v1151, %v1154
  %v1156 = vsel %vm385, %v1096, -inf
  %v1157 = vmax.f32 %v1153, %v1156
  %v1158 = vsel %vm385, %v1098, -inf
  %v1159 = vmax.f32 %v1155, %v1158
  %v1160 = vsel %vm385, %v1100, -inf
  %v1161 = vmax.f32 %v1157, %v1160
  %v1162 = vsel %vm385, %v1102, -inf
  %v1163 = vmax.f32 %v1159, %v1162
  %v1164 = vsel %vm385, %v1104, -inf
  %v1165 = vmax.f32 %v1161, %v1164
  %v1166 = vmax.f32 %v1163, %v1165
  %1169 = vrot.lane.b32.xlu0 %v690, 16
  %v1170 = vpop.permute.xlu0 %1169
  %1171 = vrot.lane.b32.xlu0 %v697, 16
  %v1172 = vpop.permute.xlu0 %1171
  %1177 = vrot.lane.b32.xlu0 %v1135, 32
  %v1178 = vpop.permute.xlu0 %1177
  %1179 = vrot.lane.b32.xlu0 %v1166, 32
  %v1180 = vpop.permute.xlu0 %1179
  %v1183 = vsel %vm385, %v402, %v1170
  %v1184 = vsel %vm385, %v419, %v1172
  %vm1185 = vcmask 261120
  %v1186 = vsel %vm1185, %v1183, %v1178
  %v1187 = vsel %vm1185, %v1184, %v1180
  %v1188 = vld [vmem:[%s9] sm:$0xff]
  %v1189 = vld [vmem:[%s9 + $0x8] sm:$0xff]
  %v1190 = vld [vmem:[%s9 + $0x10] sm:$0xff]
  %v1191 = vld [vmem:[%s9 + $0x18] sm:$0xff]
  %v1192 = vld [vmem:[%s9 + $0x20] sm:$0xff]
  %v1193 = vld [vmem:[%s9 + $0x28] sm:$0xff]
  %v1194 = vld [vmem:[%s10] sm:$0x1]
  %v1196 = vlaneseq
  %v1197 = vshrl.u32 %v1196, 7
  %v1198 = vsub.s32 0, %v1197
  %v1199 = vrot.slane %v1194, %v1198
  %vm1201 = vcmask 392192
  %v1203 = vsel %vm1201, %v1186, 0
  %v1206 = vsel %vm1201, %v1187, 0
  %1208 = vmatprep.subr.mxu0 0.0
  %1209 = vmatpush1.msra.mxu0 %v1188
  %1210 = vmatprep.subr.mxu0 0.0
  %1211 = vmatpush1.msra.mxu0 %v1189
  %1212 = vmatprep.subr.mxu0 0.0
  %1213 = vmatpush1.msra.mxu0 %v1190
  %1214 = vmatprep.subr.mxu0 0.0
  %1215 = vmatpush1.msra.mxu0 %v1191
  %1216 = vmatprep.subr.mxu0 0.0
  %1217 = vmatpush1.msra.mxu0 %v1192
  %1218 = vmatprep.subr.mxu0 0.0
  %1219 = vmatpush1.msra.mxu0 %v1193
  %1220 = vmatprep.subr.mxu0 0.0
  %1221 = vmatpush1.msra.mxu0 0.0
  %1222 = vmatprep.subr.mxu0 0.0
  %1223 = vmatpush1.msra.mxu0 0.0
  %1224 = vmatprep.subr.mxu0 0.0
  %1225 = vmatpush1.msra.mxu0 0.0
  %1226 = vmatprep.subr.mxu0 0.0
  %1227 = vmatpush1.msra.mxu0 0.0
  %1228 = vmatprep.subr.mxu0 0.0
  %1229 = vmatpush1.msra.mxu0 0.0
  %1230 = vmatprep.subr.mxu0 0.0
  %1231 = vmatpush1.msra.mxu0 0.0
  %1232 = vmatprep.subr.mxu0 0.0
  %1233 = vmatpush1.msra.mxu0 0.0
  %1234 = vmatprep.subr.mxu0 0.0
  %1235 = vmatpush1.msra.mxu0 0.0
  %1236 = vmatprep.subr.mxu0 0.0
  %1237 = vmatpush1.msra.mxu0 0.0
  %1238 = vmatprep.subr.mxu0 0.0
  %1239 = vmatpush1.msra.mxu0 0.0
  %1240 = vmatprep.subr.mxu0 0.0
  %1241 = vmatpush1.msra.mxu0 0.0
  %1242 = vmatprep.subr.mxu0 0.0
  %1243 = vmatpush1.msra.mxu0 0.0
  %1244 = vmatprep.subr.mxu0 0.0
  %1245 = vmatpush1.msra.mxu0 0.0
  %1246 = vmatprep.subr.mxu0 0.0
  %1247 = vmatpush1.msra.mxu0 0.0
  %1248 = vmatprep.subr.mxu0 0.0
  %1249 = vmatpush1.msra.mxu0 0.0
  %1250 = vmatprep.subr.mxu0 0.0
  %1251 = vmatpush1.msra.mxu0 0.0
  %1252 = vmatprep.subr.mxu0 0.0
  %1253 = vmatpush1.msra.mxu0 0.0
  %1254 = vmatprep.subr.mxu0 0.0
  %1255 = vmatpush1.msra.mxu0 0.0
  %1256 = vmatprep.subr.mxu0 0.0
  %1257 = vmatpush1.msra.mxu0 0.0
  %1258 = vmatprep.subr.mxu0 0.0
  %1259 = vmatpush1.msra.mxu0 0.0
  %1260 = vmatprep.subr.mxu0 0.0
  %1261 = vmatpush1.msra.mxu0 0.0
  %1262 = vmatprep.subr.mxu0 0.0
  %1263 = vmatpush1.msra.mxu0 0.0
  %1264 = vmatprep.subr.mxu0 0.0
  %1265 = vmatpush1.msra.mxu0 0.0
  %1266 = vmatprep.subr.mxu0 0.0
  %1267 = vmatpush1.msra.mxu0 0.0
  %1268 = vmatprep.subr.mxu0 0.0
  %1269 = vmatpush1.msra.mxu0 0.0
  %1270 = vmatprep.subr.mxu0 0.0
  %1271 = vmatpush1.msra.mxu0 0.0
  %1272 = vmatprep.mubr.f32.mxu0 0.0
  %1273 = vmatmul.mubr.f32.gmra.mrb[0].mxu0 %v1203
  %v1274 = vpop.f32.mrb[0].mxu0
  %v1275 = vadd.f32 %v1199, %v1274
  %v1276 = vpop.f32.mrb[0].mxu0
  %1277 = vmatprep.mubr.f32.mxu0 0.0
  %1278 = vmatmul.mubr.f32.gmra.mrb[0].mxu0 %v1206
  %v1279 = vpop.f32.mrb[0].mxu0
  %v1280 = vadd.f32 %v1199, %v1279
  %v1281 = vpop.f32.mrb[0].mxu0
  %1282 = vdwg.mxu0
  %v1283 = vld [vmem:[%s11] sm:$0xff]
  %v1284 = vld [vmem:[%s12] sm:$0x1]
  %v1286 = vlaneseq
  %v1287 = vshrl.u32 %v1286, 7
  %v1288 = vsub.s32 0, %v1287
  %v1289 = vrot.slane %v1284, %v1288
  %vm1291 = vcmask 64512
  %v1293 = vsel %vm1291, %v1275, 0
  %v1296 = vsel %vm1291, %v1280, 0
  %1298 = vmatprep.subr.mxu0 0.0
  %1299 = vmatpush1.msra.mxu0 %v1283
  %1300 = vmatprep.subr.mxu0 0.0
  %1301 = vmatpush1.msra.mxu0 0.0
  %1302 = vmatprep.subr.mxu0 0.0
  %1303 = vmatpush1.msra.mxu0 0.0
  %1304 = vmatprep.subr.mxu0 0.0
  %1305 = vmatpush1.msra.mxu0 0.0
  %1306 = vmatprep.subr.mxu0 0.0
  %1307 = vmatpush1.msra.mxu0 0.0
  %1308 = vmatprep.subr.mxu0 0.0
  %1309 = vmatpush1.msra.mxu0 0.0
  %1310 = vmatprep.subr.mxu0 0.0
  %1311 = vmatpush1.msra.mxu0 0.0
  %1312 = vmatprep.subr.mxu0 0.0
  %1313 = vmatpush1.msra.mxu0 0.0
  %1314 = vmatprep.subr.mxu0 0.0
  %1315 = vmatpush1.msra.mxu0 0.0
  %1316 = vmatprep.subr.mxu0 0.0
  %1317 = vmatpush1.msra.mxu0 0.0
  %1318 = vmatprep.subr.mxu0 0.0
  %1319 = vmatpush1.msra.mxu0 0.0
  %1320 = vmatprep.subr.mxu0 0.0
  %1321 = vmatpush1.msra.mxu0 0.0
  %1322 = vmatprep.subr.mxu0 0.0
  %1323 = vmatpush1.msra.mxu0 0.0
  %1324 = vmatprep.subr.mxu0 0.0
  %1325 = vmatpush1.msra.mxu0 0.0
  %1326 = vmatprep.subr.mxu0 0.0
  %1327 = vmatpush1.msra.mxu0 0.0
  %1328 = vmatprep.subr.mxu0 0.0
  %1329 = vmatpush1.msra.mxu0 0.0
  %1330 = vmatprep.subr.mxu0 0.0
  %1331 = vmatpush1.msra.mxu0 0.0
  %1332 = vmatprep.subr.mxu0 0.0
  %1333 = vmatpush1.msra.mxu0 0.0
  %1334 = vmatprep.subr.mxu0 0.0
  %1335 = vmatpush1.msra.mxu0 0.0
  %1336 = vmatprep.subr.mxu0 0.0
  %1337 = vmatpush1.msra.mxu0 0.0
  %1338 = vmatprep.subr.mxu0 0.0
  %1339 = vmatpush1.msra.mxu0 0.0
  %1340 = vmatprep.subr.mxu0 0.0
  %1341 = vmatpush1.msra.mxu0 0.0
  %1342 = vmatprep.subr.mxu0 0.0
  %1343 = vmatpush1.msra.mxu0 0.0
  %1344 = vmatprep.subr.mxu0 0.0
  %1345 = vmatpush1.msra.mxu0 0.0
  %1346 = vmatprep.subr.mxu0 0.0
  %1347 = vmatpush1.msra.mxu0 0.0
  %1348 = vmatprep.subr.mxu0 0.0
  %1349 = vmatpush1.msra.mxu0 0.0
  %1350 = vmatprep.subr.mxu0 0.0
  %1351 = vmatpush1.msra.mxu0 0.0
  %1352 = vmatprep.subr.mxu0 0.0
  %1353 = vmatpush1.msra.mxu0 0.0
  %1354 = vmatprep.subr.mxu0 0.0
  %1355 = vmatpush1.msra.mxu0 0.0
  %1356 = vmatprep.subr.mxu0 0.0
  %1357 = vmatpush1.msra.mxu0 0.0
  %1358 = vmatprep.subr.mxu0 0.0
  %1359 = vmatpush1.msra.mxu0 0.0
  %1360 = vmatprep.subr.mxu0 0.0
  %1361 = vmatpush1.msra.mxu0 0.0
  %1362 = vmatprep.mubr.f32.mxu0 0.0
  %1363 = vmatmul.mubr.f32.gmra.mrb[0].mxu0 %v1293
  %v1364 = vpop.f32.mrb[0].mxu0
  %v1365 = vadd.f32 %v1289, %v1364
  %v1366 = vpop.f32.mrb[0].mxu0
  %1367 = vmatprep.mubr.f32.mxu0 0.0
  %1368 = vmatmul.mubr.f32.gmra.mrb[0].mxu0 %v1296
  %v1369 = vpop.f32.mrb[0].mxu0
  %v1370 = vadd.f32 %v1289, %v1369
  %v1371 = vpop.f32.mrb[0].mxu0
  %1372 = vdwg.mxu0
  %1373 = vmax.xlane.f32.xlu0 %v1365
  %v1374 = vpop.xlane.xlu0 %1373
  %1375 = vmax.xlane.f32.xlu0 %v1370
  %v1376 = vpop.xlane.xlu0 %1375
  %v1377 = vsub.f32 %v1365, %v1374
  %v1378 = vsub.f32 %v1370, %v1376
  %v1379 = vmul.f32 %v1377, 1.442695
  %v1380 = vpow.pop %v1379
  %v1381 = vmul.f32 %v1378, 1.442695
  %v1382 = vpow.pop %v1381
  %1383 = vadd.xlane.f32.xlu0 %v1380
  %v1384 = vpop.xlane.xlu0 %1383
  %1385 = vadd.xlane.f32.xlu0 %v1382
  %v1386 = vpop.xlane.xlu0 %1385
  %v1387 = vrcp.pop %v1384
  %v1388 = vmul.f32 %v1380, %v1387
  %v1389 = vrcp.pop %v1386
  %v1390 = vmul.f32 %v1382, %v1389
  %1391 = vst [vmem:[%s13] sm:$0xff] %v1388
  %1392 = vst [vmem:[%s13 + $0x8] sm:$0xff] %v1390
  // Predicated region
  $region54: #{forward.1} parent=0 // pred_check
    _
  $region55: #{forward.1} parent=0 // pred_check_branch
    %1394 = sbr.rel (0) target = $region57
  $region56: #{forward.1} parent=0 // pred_region
    _
  $region57: #{forward.1} parent=0 // pred_fallthru
    _
  // Predicated region
  $region58: #{forward.1} parent=0 // pred_check
    _
  $region59: #{forward.1} parent=0 // pred_check_branch
    %1396 = sbr.rel (0) target = $region61
  $region60: #{forward.1} parent=0 // pred_region
    _
  $region61: #{forward.1} parent=0 // pred_fallthru
    _

</llo_original>
